<compile_context>
chip_gen: v7x
topology: tpu7x:2x2x1
jax: 0.10.0
libtpu: 0.0.40
codegen_flags: <defaults>
</compile_context>

<pallas_src>
import jax
import jax.numpy as jnp
import numpy as np
from jax import lax
from jax.experimental import pallas as pl
from jax.experimental.pallas import tpu as pltpu


def _matmul_bias_prelu_kernel(w_ref, p_ref, a_ref, o_ref):
    # w_ref: (Cout, Kpad)   weights with the bias folded in (lane dim Kpad, multiple of 128)
    # p_ref: (TP, Kpad)     im2col patch tile (ones column at index Kdim feeds the bias)
    # a_ref: (1,)  [SMEM]   PReLU slope (single shared parameter)
    # o_ref: (Cout, TP)     channel-major conv+PReLU output tile (lane-dense, TP % 128 == 0)
    acc = lax.dot_general(
        w_ref[...], p_ref[...],
        dimension_numbers=(((1,), (1,)), ((), ())),   # "NT": contract both minor dims
        preferred_element_type=jnp.float32,
    )
    alpha = a_ref[0]
    o_ref[...] = jnp.where(acc >= 0, acc, alpha * acc).astype(o_ref.dtype)


def conv_prelu_pallas(w_aug, patches_aug, alpha_arr, *, tile_pixels):
    """w_aug: (Cout, Kpad); patches_aug: (P_pad, Kpad); alpha_arr: (1,) f32.
    Returns channel-major conv+bias+PReLU output of shape (Cout, P_pad), f32."""
    P_pad, Kpad = patches_aug.shape
    Cout = w_aug.shape[0]
    TP = tile_pixels
    assert P_pad % TP == 0 and TP % 128 == 0 and Kpad % 128 == 0
    n_tiles = P_pad // TP

    return pl.pallas_call(
        _matmul_bias_prelu_kernel,
        out_shape=jax.ShapeDtypeStruct((Cout, P_pad), jnp.float32),
        grid_spec=pltpu.PrefetchScalarGridSpec(
            num_scalar_prefetch=0,
            grid=(n_tiles,),
            in_specs=[
                # Weights: same block every step -> loaded once and kept resident.
                pl.BlockSpec((Cout, Kpad), lambda t: (0, 0)),
                pl.BlockSpec((TP, Kpad), lambda t: (t, 0)),
                pl.BlockSpec(memory_space=pltpu.MemorySpace.SMEM),   # PReLU slope
            ],
            out_specs=pl.BlockSpec((Cout, TP), lambda t: (0, t)),
        ),
        compiler_params=pltpu.CompilerParams(
            dimension_semantics=("parallel",),
            vmem_limit_bytes=32 * 1024 * 1024,
        ),
    )(w_aug, patches_aug, alpha_arr)


def subpixel_conv_block(x_nchw, w_oihw, bias, alpha, scaling_factor,
                        *, tile_pixels=256, use_bf16=False):
    """Full SubPixelConvolutionalBlock forward. x_nchw: (N, C, H, W) -> (N, C, H*r, W*r)."""
    N, Cin, H, W = x_nchw.shape
    Cout, Cin_w, KH, KW = w_oihw.shape
    assert Cin_w == Cin
    r = scaling_factor
    C = Cout // (r * r)
    assert C * r * r == Cout
    ph, pw = KH // 2, KW // 2

    # Fusing PReLU before the pixel shuffle requires a single shared slope (nn.PReLU()).
    alpha_arr = jnp.asarray(alpha, jnp.float32).reshape(-1)
    assert alpha_arr.shape == (1,), "PReLU fusion requires a single shared parameter"

    # ---- im2col in XLA (small-image regime): one fused pass over the tiny input. ----
    x_nhwc = jnp.transpose(x_nchw, (0, 2, 3, 1)).astype(jnp.float32)
    x_pad = jnp.pad(x_nhwc, ((0, 0), (ph, ph), (pw, pw), (0, 0)))
    taps = [x_pad[:, kh:kh + H, kw:kw + W, :] for kh in range(KH) for kw in range(KW)]
    patches = jnp.concatenate(taps, axis=-1).reshape(N * H * W, KH * KW * Cin)

    Kdim = KH * KW * Cin
    Kpad = ((Kdim + 1 + 127) // 128) * 128          # + bias column, padded lane-dense
    P = N * H * W
    TP = max(128, (tile_pixels // 128) * 128)       # lane-dense output tile
    P_pad = ((P + TP - 1) // TP) * TP

    patches_aug = jnp.zeros((P_pad, Kpad), jnp.float32)
    patches_aug = patches_aug.at[:P, :Kdim].set(patches)
    patches_aug = patches_aug.at[:P, Kdim].set(1.0)                 # bias column

    # Weights: OIHW -> (Cout, kh*kw*cin), matching the tap concatenation order; bias folded.
    w2 = jnp.transpose(w_oihw, (0, 2, 3, 1)).reshape(Cout, Kdim).astype(jnp.float32)
    w_aug = jnp.zeros((Cout, Kpad), jnp.float32)
    w_aug = w_aug.at[:, :Kdim].set(w2)
    w_aug = w_aug.at[:, Kdim].set(bias.astype(jnp.float32))

    if use_bf16:
        # v6e/v7x MXUs are bf16-native (f32 accumulate); slightly changes numerics.
        patches_aug = patches_aug.astype(jnp.bfloat16)
        w_aug = w_aug.astype(jnp.bfloat16)

    y = conv_prelu_pallas(w_aug, patches_aug, alpha_arr, tile_pixels=TP)  # (Cout, P_pad)

    # ---- pixel shuffle (PyTorch semantics); PReLU already applied (shared slope). ----
    y = y[:, :P].reshape(C, r, r, N, H, W)
    y = jnp.transpose(y, (3, 0, 4, 1, 5, 2))        # (N, C, H, r, W, r): single pass
    return y.reshape(N, C, H * r, W * r)


def _reference(x_nchw, w_oihw, bias, alpha, r):
    """Pure-JAX reference (conv -> pixel shuffle -> PReLU), PyTorch semantics."""
    KH, KW = w_oihw.shape[2], w_oihw.shape[3]
    y = lax.conv_general_dilated(
        x_nchw, w_oihw, window_strides=(1, 1),
        padding=[(KH // 2, KH // 2), (KW // 2, KW // 2)],
        dimension_numbers=("NCHW", "OIHW", "NCHW"),
    ) + bias.reshape(1, -1, 1, 1)
    N, Crr, H, W = y.shape
    C = Crr // (r * r)
    y = y.reshape(N, C, r, r, H, W)
    y = jnp.transpose(y, (0, 1, 4, 2, 5, 3)).reshape(N, C, H * r, W * r)
    return jnp.where(y >= 0, y, alpha * y)


if __name__ == "__main__":
    # Small, TPU-friendly shapes consistent with the module:
    # n_channels=8, kernel_size=3, scaling_factor=2, input (N=2, C=8, H=W=16).
    n_channels = 8
    kernel_size = 3
    scaling_factor = 2
    N, H, W = 2, 16, 16
    Cout = n_channels * scaling_factor ** 2

    key = jax.random.PRNGKey(0)
    kx, kw, kb = jax.random.split(key, 3)

    x = jax.random.normal(kx, (N, n_channels, H, W), dtype=jnp.float32)

    # Deterministic parameter init (PyTorch-like uniform fan-in bounds).
    fan_in = n_channels * kernel_size * kernel_size
    bound = 1.0 / np.sqrt(fan_in)
    w = jax.random.uniform(kw, (Cout, n_channels, kernel_size, kernel_size),
                           minval=-bound, maxval=bound, dtype=jnp.float32)
    b = jax.random.uniform(kb, (Cout,), minval=-bound, maxval=bound,
                           dtype=jnp.float32)
    alpha = jnp.float32(0.25)  # nn.PReLU() default init (single shared parameter)

    out = subpixel_conv_block(x, w, b, alpha, scaling_factor)
    out = jax.block_until_ready(out)

    assert out.shape == (N, n_channels, H * scaling_factor, W * scaling_factor)

    ref = jax.block_until_ready(_reference(x, w, b, alpha, scaling_factor))
    np.testing.assert_allclose(np.asarray(out), np.asarray(ref),
                               rtol=1e-5, atol=2e-5)

    print("KERNEL_OK")
</pallas_src>

<mosaic_0001>
module attributes {stable_mosaic.version = 11 : i64} {
  func.func @_matmul_bias_prelu_kernel(%arg0: i32, %arg1: memref<32x128xf32, #tpu.memory_space<vmem>>, %arg2: memref<256x128xf32, #tpu.memory_space<vmem>>, %arg3: memref<1xf32, #tpu.memory_space<smem>>, %arg4: memref<32x256xf32, #tpu.memory_space<vmem>>) attributes {dimension_semantics = [#tpu.dimension_semantics<parallel>], iteration_bounds = array<i64: 2>, scalar_prefetch = 0 : i64, scratch_operands = 0 : i64, tpu.core_type = #tpu.core_type<tc>, window_params = [{pipeline_mode = #tpu.pipeline_mode<synchronous>, transform_indices = @transform_0, window_bounds = array<i64: 32, 128>}, {transform_indices = @transform_1, window_bounds = array<i64: 256, 128>}, {transform_indices = @transform_2, window_bounds = array<i64: 1>}, {transform_indices = @transform_3, window_bounds = array<i64: 32, 256>}]} {
    %c0 = arith.constant 0 : index
    %c0_0 = arith.constant 0 : index
    %0 = vector.load %arg1[%c0, %c0_0] : memref<32x128xf32, #tpu.memory_space<vmem>>, vector<32x128xf32>
    %c0_1 = arith.constant 0 : index
    %c0_2 = arith.constant 0 : index
    %1 = vector.load %arg2[%c0_1, %c0_2] : memref<256x128xf32, #tpu.memory_space<vmem>>, vector<256x128xf32>
    %cst = arith.constant dense<0.000000e+00> : vector<32x256xf32>
    %2 = tpu.matmul %0, %1, %cst {dimension_numbers = #tpu.dot_dimension_numbers<[1], [1], [0], [0], [0, 0, 1, 0], [], []>} : vector<32x128xf32>, vector<256x128xf32>, vector<32x256xf32> -> vector<32x256xf32>
    %c0_3 = arith.constant 0 : index
    %3 = memref.load %arg3[%c0_3] : memref<1xf32, #tpu.memory_space<smem>>
    %cst_4 = arith.constant 0.000000e+00 : f32
    %4 = vector.broadcast %cst_4 : f32 to vector<32x256xf32>
    %5 = arith.cmpf oge, %2, %4 : vector<32x256xf32>
    %6 = vector.broadcast %3 : f32 to vector<32x256xf32>
    %7 = arith.mulf %6, %2 : vector<32x256xf32>
    %8 = arith.select %5, %2, %7 : vector<32x256xi1>, vector<32x256xf32>
    %c0_5 = arith.constant 0 : index
    %c0_6 = arith.constant 0 : index
    %9 = vector.load %arg4[%c0_5, %c0_6] : memref<32x256xf32, #tpu.memory_space<vmem>>, vector<32x256xf32>
    tpu.vector_store %arg4[%c0_5, %c0_6], %8 {strides = array<i32>} : memref<32x256xf32, #tpu.memory_space<vmem>>, vector<32x256xf32>,
    return
  }
  func.func @transform_0(%arg0: i32) -> (i32, i32) {
    %c0_i32 = arith.constant 0 : i32
    %c0_i32_0 = arith.constant 0 : i32
    %c0_i32_1 = arith.constant 0 : i32
    return %c0_i32, %c0_i32_0 : i32, i32
  }
  func.func @transform_1(%arg0: i32) -> (i32, i32) {
    %c0_i32 = arith.constant 0 : i32
    %c0_i32_0 = arith.constant 0 : i32
    return %arg0, %c0_i32 : i32, i32
  }
  func.func @transform_2(%arg0: i32) -> i32 {
    %c0_i32 = arith.constant 0 : i32
    %c0_i32_0 = arith.constant 0 : i32
    return %c0_i32 : i32
  }
  func.func @transform_3(%arg0: i32) -> (i32, i32) {
    %c0_i32 = arith.constant 0 : i32
    %c0_i32_0 = arith.constant 0 : i32
    return %c0_i32, %arg0 : i32, i32
  }
}

</mosaic_0001>

<llo_original>
// kernel: tpu_custom_call.1
$region0: #{tpu_custom_call.1}
  #allocation0 [shape = 'u32[]', space=smem, size = 0x4, offset = 0x4, fixed_abs, tag = 'smem constant byte address 0x4 - core index']
  #allocation1 [shape = 'u32[144,128]{1,0:T(1,128)}', space=vmem, size = 0x12000, scoped, tag = 'internal scratch']
  #allocation2 [shape = 'f32[1]{0:T(128)S(6)}', space=smem, size = 0x200, scoped, tag = 'scoped memory for tpu_custom_call.1']
  %s0 = inlined_call_operand.hbm [shape: f32[32,128], index: 0, kind: input, shape index: {}]
  %s1 = inlined_call_operand.hbm [shape: f32[512,128], index: 1, kind: input, shape index: {}]
  %s2 = inlined_call_operand.<no memory space> [shape: f32[1], index: 2, kind: input, shape index: {}]
  %s3 = inlined_call_operand.hbm [shape: f32[32,512], index: 3, kind: output, shape index: {}]
  %s4 = sld [smem:[#allocation0]]
  $region53: #{tpu_custom_call.1} parent=0
    _
  %s6 = ssub.s32 1, %s4
  %s7 = scalar_select 0, %s6, %s4
  %8 = sst [smem:[#allocation2]] %s2
  $region1: #{tpu_custom_call.1} parent=0
    #allocation3 [shape = 'u8[16384]{0}', space=vmem, size = 0x4000, scoped, tag = 'input window, operand 0, single buffered']
    #allocation4 [shape = 's32[2]{0}', space=sflag, size = 0x8, scoped, tag = 'scoped memory for tpu_custom_call.1']
    #allocation5 [shape = 's32[2]{0}', space=sflag, size = 0x8, scoped, tag = 'scoped memory for tpu_custom_call.1']
    #allocation6 [shape = 'u8[262144]{0}', space=vmem, size = 0x40000, scoped, tag = 'input window, operand 1']
    #allocation7 [shape = 's32[2]{0}', space=sflag, size = 0x8, scoped, tag = 'scoped memory for tpu_custom_call.1']
    #allocation8 [shape = 'u8[65536]{0}', space=vmem, size = 0x10000, scoped, tag = 'output window, operand 0']
    %9 = vsyncpa [#allocation4], 0
    %10 = vsyncpa [#allocation7], 0
    %s11 = scalar_lea.sflag [#allocation7], 1
    %12 = vsyncpa %s11, 0
    %13 = vsyncpa [#allocation5], 0
    %s14 = scalar_lea.sflag [#allocation5], 1
    %15 = vsyncpa %s14, 0
    loop: start=0, step=1, limit=4
    $region2: #{tpu_custom_call.1} parent=1 // loop_pre_header
      _
    $region3: #{tpu_custom_call.1} parent=1 // loop_header
      %s17 = sphi 0, %s21
      %p18 = scmp.ge.s32.totalorder %s17, 4
      %s25 = sphi 0, %s25
      %s27 = sphi 0, %s25
      %s28 = sphi 0, %s27
      %s42 = sphi 0, %s28
      %s48 = sphi 0, %s50
      %s51 = sphi 0, %s48
      %s52 = sphi 0, %s51
      %s68 = sphi 0, %s52
      %s72 = sphi 0, %s72
      %s74 = sphi 0, %s72
      %s75 = sphi 0, %s74
      %s89 = sphi 0, %s75
      %s95 = sphi 0, %s97
      %s98 = sphi 0, %s95
      %s99 = sphi 0, %s98
      %s115 = sphi 0, %s99
    $region4: #{tpu_custom_call.1} parent=1 // loop_header_branch
      %20 = sbr.rel (%p18) target = $region8
    $region5: #{tpu_custom_call.1} parent=1 // loop_body
      %s22 = ssub.s32 %s17, 1
      %s23 = ssub.s32 %s17, 2
      %s24 = sadd.s32 %s17, 1
      %s26 = sadd.s32 %s25, 1
      %p29 = scmp.eq.s32.totalorder %s17, 1
      %p30 = scmp.ne.s32.totalorder %s25, %s27
      %p31 = scmp.eq.s32.totalorder %s17, 0
      %p32 = por %p30, %p31
      %p33 = scmp.ne.s32.totalorder %s25, %s27
      %p34 = scmp.eq.s32.totalorder %s22, 1
      %p35 = por %p33, %p34
      %p36 = scmp.ne.s32.totalorder %s27, %s28
      %p37 = scmp.eq.s32.totalorder %s22, 0
      %p38 = por %p36, %p37
      %p39 = scmp.ne.s32.totalorder %s27, %s28
      %p40 = scmp.eq.s32.totalorder %s23, 1
      %p41 = por %p39, %p40
      %p43 = scmp.ne.s32.totalorder %s28, %s42
      %p44 = scmp.eq.s32.totalorder %s23, 0
      %p45 = por %p43, %p44
      %s46 = ssub.s32 %s17, %s24
      %p47 = scmp.eq.s32.totalorder %s46, 0
      %s49 = sadd.s32 %s48, 1
      %s50 = scalar_select %p47, %s48, %s49
      %p53 = pneg %p47
      %p54 = scmp.eq.s32.totalorder %s17, 1
      %p55 = por %p53, %p54
      %p56 = scmp.ne.s32.totalorder %s48, %s51
      %p57 = scmp.eq.s32.totalorder %s17, 0
      %p58 = por %p56, %p57
      %p59 = scmp.ne.s32.totalorder %s48, %s51
      %p60 = scmp.eq.s32.totalorder %s22, 1
      %p61 = por %p59, %p60
      %p62 = scmp.ne.s32.totalorder %s51, %s52
      %p63 = scmp.eq.s32.totalorder %s22, 0
      %p64 = por %p62, %p63
      %p65 = scmp.ne.s32.totalorder %s51, %s52
      %p66 = scmp.eq.s32.totalorder %s23, 1
      %p67 = por %p65, %p66
      %p69 = scmp.ne.s32.totalorder %s52, %s68
      %p70 = scmp.eq.s32.totalorder %s23, 0
      %p71 = por %p69, %p70
      %s73 = sadd.s32 %s72, 1
      %p76 = scmp.eq.s32.totalorder %s17, 1
      %p77 = scmp.ne.s32.totalorder %s72, %s74
      %p78 = scmp.eq.s32.totalorder %s17, 0
      %p79 = por %p77, %p78
      %p80 = scmp.ne.s32.totalorder %s72, %s74
      %p81 = scmp.eq.s32.totalorder %s22, 1
      %p82 = por %p80, %p81
      %p83 = scmp.ne.s32.totalorder %s74, %s75
      %p84 = scmp.eq.s32.totalorder %s22, 0
      %p85 = por %p83, %p84
      %p86 = scmp.ne.s32.totalorder %s74, %s75
      %p87 = scmp.eq.s32.totalorder %s23, 1
      %p88 = por %p86, %p87
      %p90 = scmp.ne.s32.totalorder %s75, %s89
      %p91 = scmp.eq.s32.totalorder %s23, 0
      %p92 = por %p90, %p91
      %s93 = ssub.s32 %s17, %s24
      %p94 = scmp.eq.s32.totalorder %s93, 0
      %s96 = sadd.s32 %s95, 1
      %s97 = scalar_select %p94, %s95, %s96
      %p100 = pneg %p94
      %p101 = scmp.eq.s32.totalorder %s17, 1
      %p102 = por %p100, %p101
      %p103 = scmp.ne.s32.totalorder %s95, %s98
      %p104 = scmp.eq.s32.totalorder %s17, 0
      %p105 = por %p103, %p104
      %p106 = scmp.ne.s32.totalorder %s95, %s98
      %p107 = scmp.eq.s32.totalorder %s22, 1
      %p108 = por %p106, %p107
      %p109 = scmp.ne.s32.totalorder %s98, %s99
      %p110 = scmp.eq.s32.totalorder %s22, 0
      %p111 = por %p109, %p110
      %p112 = scmp.ne.s32.totalorder %s98, %s99
      %p113 = scmp.eq.s32.totalorder %s23, 1
      %p114 = por %p112, %p113
      %p116 = scmp.ne.s32.totalorder %s99, %s115
      %p117 = scmp.eq.s32.totalorder %s23, 0
      %p118 = por %p116, %p117
      %p119 = scmp.le.s32.totalorder 1, %s17
      %p120 = scmp.lt.s32.totalorder %s17, 3
      %p121 = pnand %p119, %p120
      %p122 = pneg %p121
      // Predicated region
      $region9: #{tpu_custom_call.1} parent=5 // pred_check
        _
      $region10: #{tpu_custom_call.1} parent=5 // pred_check_branch
        %124 = sbr.rel (%p121) target = $region12
      $region11: #{tpu_custom_call.1} parent=5 // pred_region
        %s125 = ssub.s32 %s17, 1
        // Predicated region
        $region13: #{tpu_custom_call.1} parent=11 // pred_check
          %p126 = pneg %p38
        $region14: #{tpu_custom_call.1} parent=11 // pred_check_branch
          %128 = sbr.rel (%p126) target = $region16
        $region15: #{tpu_custom_call.1} parent=11 // pred_region
          %s130 = ssub.s32 512, 512
          %131 = vsyncadd [#allocation4], %s130
          %s132 = sshll.u32 [#allocation3], 4
          %s133 = int_to_ptr.vmem [resolvable:$true] %s132
          %138 = dma.hbm_to_vmem [thread:$0]  %s0, 512, %s133, [#allocation4], 128, 128, 8
        $region16: #{tpu_custom_call.1} parent=11 // pred_fallthru
          _
        // Predicated region
        $region17: #{tpu_custom_call.1} parent=11 // pred_check
          %p139 = pneg %p85
        $region18: #{tpu_custom_call.1} parent=11 // pred_check_branch
          %141 = sbr.rel (%p139) target = $region20
        $region19: #{tpu_custom_call.1} parent=11 // pred_region
          _
        $region20: #{tpu_custom_call.1} parent=11 // pred_fallthru
          _
      $region12: #{tpu_custom_call.1} parent=5 // pred_fallthru
        _
      %p142 = scmp.lt.s32.totalorder %s17, 2
      // Predicated region
      $region21: #{tpu_custom_call.1} parent=5 // pred_check
        %p143 = pneg %p142
      $region22: #{tpu_custom_call.1} parent=5 // pred_check_branch
        %145 = sbr.rel (%p143) target = $region24
      $region23: #{tpu_custom_call.1} parent=5 // pred_region
        // Predicated region
        $region25: #{tpu_custom_call.1} parent=23 // pred_check
          %p146 = pneg %p58
        $region26: #{tpu_custom_call.1} parent=23 // pred_check_branch
          %148 = sbr.rel (%p146) target = $region28
        $region27: #{tpu_custom_call.1} parent=23 // pred_region
          %s149 = sand.u32 %s48, 1
          %s150 = scalar_lea.sflag [#allocation7], %s149
          %s151 = sand.u32 %s48, 1
          %s152 = smul.addr %s151, 256
          %s153 = scalar_lea.vmem [#allocation6], %s152
          %s154 = smul.u32 32, %s17
          %s156 = ssub.s32 4096, 4096
          %157 = vsyncadd %s150, %s156
          %s158 = smul.addr %s154, 128
          %s159 = scalar_lea.hbm %s1, %s158
          %s160 = sshll.u32 %s153, 4
          %s161 = int_to_ptr.vmem [resolvable:$true] %s160
          %166 = dma.hbm_to_vmem [thread:$0]  %s159, 4096, %s161, %s150, 128, 128, 8
        $region28: #{tpu_custom_call.1} parent=23 // pred_fallthru
          _
      $region24: #{tpu_custom_call.1} parent=5 // pred_fallthru
        _
      %p167 = scmp.le.s32.totalorder 1, %s17
      %p168 = scmp.lt.s32.totalorder %s17, 3
      %p169 = pnand %p167, %p168
      %p170 = pneg %p169
      // Predicated region
      $region29: #{tpu_custom_call.1} parent=5 // pred_check
        _
      $region30: #{tpu_custom_call.1} parent=5 // pred_check_branch
        %172 = sbr.rel (%p169) target = $region32
      $region31: #{tpu_custom_call.1} parent=5 // pred_region
        %s173 = ssub.s32 %s17, 1
        // Predicated region
        $region33: #{tpu_custom_call.1} parent=31 // pred_check
          %p174 = pneg %p38
        $region34: #{tpu_custom_call.1} parent=31 // pred_check_branch
          %176 = sbr.rel (%p174) target = $region36
        $region35: #{tpu_custom_call.1} parent=31 // pred_region
          %177 = dma.done [#allocation4], 512
        $region36: #{tpu_custom_call.1} parent=31 // pred_fallthru
          _
        %s178 = sand.u32 %s51, 1
        %s179 = scalar_lea.sflag [#allocation7], %s178
        %s180 = sand.u32 %s51, 1
        %s181 = smul.addr %s180, 256
        %s182 = scalar_lea.vmem [#allocation6], %s181
        // Predicated region
        $region37: #{tpu_custom_call.1} parent=31 // pred_check
          %p183 = pneg %p64
        $region38: #{tpu_custom_call.1} parent=31 // pred_check_branch
          %185 = sbr.rel (%p183) target = $region40
        $region39: #{tpu_custom_call.1} parent=31 // pred_region
          %186 = dma.done %s179, 4096
        $region40: #{tpu_custom_call.1} parent=31 // pred_fallthru
          _
        %p187 = pneg %p38
        %p188 = pneg %p35
        %s189 = sand.u32 %s51, 1
        %s190 = scalar_lea.sflag [#allocation7], %s189
        %s191 = sand.u32 %s51, 1
        %s192 = smul.addr %s191, 256
        %s193 = scalar_lea.vmem [#allocation6], %s192
        %p194 = pneg %p64
        %p195 = pneg %p61
        %p196 = pneg %p85
        %p197 = pneg %p82
        %p198 = pneg %p111
        %p199 = pneg %p108
        %s200 = sand.u32 %s98, 1
        %s201 = scalar_lea.sflag [#allocation5], %s200
        %s202 = sand.u32 %s98, 1
        %s203 = smul.addr %s202, 64
        %s204 = scalar_lea.vmem [#allocation8], %s203
        %s205 = smul.u32 32, %s22
        %s206 = smul.u32 2, %s22
        %v207 = vld [vmem:[#allocation3] sm:$0xff]
        %v208 = vld [vmem:[#allocation3 + $0x8] sm:$0xff]
        %v209 = vld [vmem:[#allocation3 + $0x10] sm:$0xff]
        %v210 = vld [vmem:[#allocation3 + $0x18] sm:$0xff]
        %v211 = vld [vmem:[%s182] sm:$0xff]
        %v212 = vld [vmem:[%s182 + $0x8] sm:$0xff]
        %v213 = vld [vmem:[%s182 + $0x10] sm:$0xff]
        %v214 = vld [vmem:[%s182 + $0x18] sm:$0xff]
        %v215 = vld [vmem:[%s182 + $0x20] sm:$0xff]
        %v216 = vld [vmem:[%s182 + $0x28] sm:$0xff]
        %v217 = vld [vmem:[%s182 + $0x30] sm:$0xff]
        %v218 = vld [vmem:[%s182 + $0x38] sm:$0xff]
        %v219 = vld [vmem:[%s182 + $0x40] sm:$0xff]
        %v220 = vld [vmem:[%s182 + $0x48] sm:$0xff]
        %v221 = vld [vmem:[%s182 + $0x50] sm:$0xff]
        %v222 = vld [vmem:[%s182 + $0x58] sm:$0xff]
        %v223 = vld [vmem:[%s182 + $0x60] sm:$0xff]
        %v224 = vld [vmem:[%s182 + $0x68] sm:$0xff]
        %v225 = vld [vmem:[%s182 + $0x70] sm:$0xff]
        %v226 = vld [vmem:[%s182 + $0x78] sm:$0xff]
        %v227 = vld [vmem:[%s182 + $0x80] sm:$0xff]
        %v228 = vld [vmem:[%s182 + $0x88] sm:$0xff]
        %v229 = vld [vmem:[%s182 + $0x90] sm:$0xff]
        %v230 = vld [vmem:[%s182 + $0x98] sm:$0xff]
        %v231 = vld [vmem:[%s182 + $0xa0] sm:$0xff]
        %v232 = vld [vmem:[%s182 + $0xa8] sm:$0xff]
        %v233 = vld [vmem:[%s182 + $0xb0] sm:$0xff]
        %v234 = vld [vmem:[%s182 + $0xb8] sm:$0xff]
        %v235 = vld [vmem:[%s182 + $0xc0] sm:$0xff]
        %v236 = vld [vmem:[%s182 + $0xc8] sm:$0xff]
        %v237 = vld [vmem:[%s182 + $0xd0] sm:$0xff]
        %v238 = vld [vmem:[%s182 + $0xd8] sm:$0xff]
        %v239 = vld [vmem:[%s182 + $0xe0] sm:$0xff]
        %v240 = vld [vmem:[%s182 + $0xe8] sm:$0xff]
        %v241 = vld [vmem:[%s182 + $0xf0] sm:$0xff]
        %v242 = vld [vmem:[%s182 + $0xf8] sm:$0xff]
        %243 = vmatprep.subr.mxu0 0.0
        %244 = vmatpush1.xpose.msra.mxu0 %v211
        %245 = vmatprep.subr.mxu0 0.0
        %246 = vmatpush1.xpose.msra.mxu0 %v212
        %247 = vmatprep.subr.mxu0 0.0
        %248 = vmatpush1.xpose.msra.mxu0 %v213
        %249 = vmatprep.subr.mxu0 0.0
        %250 = vmatpush1.xpose.msra.mxu0 %v214
        %251 = vmatprep.subr.mxu0 0.0
        %252 = vmatpush1.xpose.msra.mxu0 %v215
        %253 = vmatprep.subr.mxu0 0.0
        %254 = vmatpush1.xpose.msra.mxu0 %v216
        %255 = vmatprep.subr.mxu0 0.0
        %256 = vmatpush1.xpose.msra.mxu0 %v217
        %257 = vmatprep.subr.mxu0 0.0
        %258 = vmatpush1.xpose.msra.mxu0 %v218
        %259 = vmatprep.subr.mxu0 0.0
        %260 = vmatpush1.xpose.msra.mxu0 %v219
        %261 = vmatprep.subr.mxu0 0.0
        %262 = vmatpush1.xpose.msra.mxu0 %v220
        %263 = vmatprep.subr.mxu0 0.0
        %264 = vmatpush1.xpose.msra.mxu0 %v221
        %265 = vmatprep.subr.mxu0 0.0
        %266 = vmatpush1.xpose.msra.mxu0 %v222
        %267 = vmatprep.subr.mxu0 0.0
        %268 = vmatpush1.xpose.msra.mxu0 %v223
        %269 = vmatprep.subr.mxu0 0.0
        %270 = vmatpush1.xpose.msra.mxu0 %v224
        %271 = vmatprep.subr.mxu0 0.0
        %272 = vmatpush1.xpose.msra.mxu0 %v225
        %273 = vmatprep.subr.mxu0 0.0
        %274 = vmatpush1.xpose.msra.mxu0 %v226
        %275 = vmatprep.subr.mxu0 0.0
        %276 = vmatpush1.xpose.msra.mxu0 %v227
        %277 = vmatprep.subr.mxu0 0.0
        %278 = vmatpush1.xpose.msra.mxu0 %v228
        %279 = vmatprep.subr.mxu0 0.0
        %280 = vmatpush1.xpose.msra.mxu0 %v229
        %281 = vmatprep.subr.mxu0 0.0
        %282 = vmatpush1.xpose.msra.mxu0 %v230
        %283 = vmatprep.subr.mxu0 0.0
        %284 = vmatpush1.xpose.msra.mxu0 %v231
        %285 = vmatprep.subr.mxu0 0.0
        %286 = vmatpush1.xpose.msra.mxu0 %v232
        %287 = vmatprep.subr.mxu0 0.0
        %288 = vmatpush1.xpose.msra.mxu0 %v233
        %289 = vmatprep.subr.mxu0 0.0
        %290 = vmatpush1.xpose.msra.mxu0 %v234
        %291 = vmatprep.subr.mxu0 0.0
        %292 = vmatpush1.xpose.msra.mxu0 %v235
        %293 = vmatprep.subr.mxu0 0.0
        %294 = vmatpush1.xpose.msra.mxu0 %v236
        %295 = vmatprep.subr.mxu0 0.0
        %296 = vmatpush1.xpose.msra.mxu0 %v237
        %297 = vmatprep.subr.mxu0 0.0
        %298 = vmatpush1.xpose.msra.mxu0 %v238
        %299 = vmatprep.subr.mxu0 0.0
        %300 = vmatpush1.xpose.msra.mxu0 %v239
        %301 = vmatprep.subr.mxu0 0.0
        %302 = vmatpush1.xpose.msra.mxu0 %v240
        %303 = vmatprep.subr.mxu0 0.0
        %304 = vmatpush1.xpose.msra.mxu0 %v241
        %305 = vmatprep.subr.mxu0 0.0
        %306 = vmatpush1.xpose.msra.mxu0 %v242
        %307 = vmatprep.mubr.f32.mxu0 0.0
        %308 = vmatmul.mubr.f32.gmra.mrb[0].mxu0 %v207
        %v309 = vpop.f32.mrb[0].mxu0
        %v310 = vadd.f32 0.0, %v309
        %v311 = vpop.f32.mrb[0].mxu0
        %v312 = vadd.f32 0.0, %v311
        %313 = vmatprep.mubr.f32.mxu0 0.0
        %314 = vmatmul.mubr.f32.gmra.mrb[0].mxu0 %v208
        %v315 = vpop.f32.mrb[0].mxu0
        %v316 = vadd.f32 0.0, %v315
        %v317 = vpop.f32.mrb[0].mxu0
        %v318 = vadd.f32 0.0, %v317
        %319 = vmatprep.mubr.f32.mxu0 0.0
        %320 = vmatmul.mubr.f32.gmra.mrb[0].mxu0 %v209
        %v321 = vpop.f32.mrb[0].mxu0
        %v322 = vadd.f32 0.0, %v321
        %v323 = vpop.f32.mrb[0].mxu0
        %v324 = vadd.f32 0.0, %v323
        %325 = vmatprep.mubr.f32.mxu0 0.0
        %326 = vmatmul.mubr.f32.gmra.mrb[0].mxu0 %v210
        %v327 = vpop.f32.mrb[0].mxu0
        %v328 = vadd.f32 0.0, %v327
        %v329 = vpop.f32.mrb[0].mxu0
        %v330 = vadd.f32 0.0, %v329
        %331 = vdwg.mxu0
        %s332 = sld [smem:[#allocation2]]
        %vm333 = vcmp.ge.f32.partialorder %v310, 0.0
        %vm334 = vcmp.ge.f32.partialorder %v312, 0.0
        %vm335 = vcmp.ge.f32.partialorder %v316, 0.0
        %vm336 = vcmp.ge.f32.partialorder %v318, 0.0
        %vm337 = vcmp.ge.f32.partialorder %v322, 0.0
        %vm338 = vcmp.ge.f32.partialorder %v324, 0.0
        %vm339 = vcmp.ge.f32.partialorder %v328, 0.0
        %vm340 = vcmp.ge.f32.partialorder %v330, 0.0
        %v341 = vstv %s332
        %v342 = vmul.f32 %v341, %v310
        %v343 = vmul.f32 %v341, %v312
        %v344 = vmul.f32 %v341, %v316
        %v345 = vmul.f32 %v341, %v318
        %v346 = vmul.f32 %v341, %v322
        %v347 = vmul.f32 %v341, %v324
        %v348 = vmul.f32 %v341, %v328
        %v349 = vmul.f32 %v341, %v330
        %v350 = vsel %vm333, %v310, %v342
        %v351 = vsel %vm334, %v312, %v343
        %v352 = vsel %vm335, %v316, %v344
        %v353 = vsel %vm336, %v318, %v345
        %v354 = vsel %vm337, %v322, %v346
        %v355 = vsel %vm338, %v324, %v347
        %v356 = vsel %vm339, %v328, %v348
        %v357 = vsel %vm340, %v330, %v349
        %358 = vst [vmem:[%s204] sm:$0xff] %v350
        %359 = vst [vmem:[%s204 + $0x8] sm:$0xff] %v351
        %360 = vst [vmem:[%s204 + $0x10] sm:$0xff] %v352
        %361 = vst [vmem:[%s204 + $0x18] sm:$0xff] %v353
        %362 = vst [vmem:[%s204 + $0x20] sm:$0xff] %v354
        %363 = vst [vmem:[%s204 + $0x28] sm:$0xff] %v355
        %364 = vst [vmem:[%s204 + $0x30] sm:$0xff] %v356
        %365 = vst [vmem:[%s204 + $0x38] sm:$0xff] %v357
        %s366 = sand.u32 %s98, 1
        %s367 = scalar_lea.sflag [#allocation5], %s366
        %s368 = sand.u32 %s98, 1
        %s369 = smul.addr %s368, 64
        %s370 = scalar_lea.vmem [#allocation8], %s369
        // Predicated region
        $region41: #{tpu_custom_call.1} parent=31 // pred_check
          %p371 = pneg %p108
        $region42: #{tpu_custom_call.1} parent=31 // pred_check_branch
          %373 = sbr.rel (%p371) target = $region44
        $region43: #{tpu_custom_call.1} parent=31 // pred_region
          %s374 = smul.u32 2, %s22
          %s376 = ssub.s32 1024, 1024
          %377 = vsyncadd %s367, %s376
          %s378 = smul.addr %s374, 128
          %s379 = scalar_lea.hbm %s3, %s378
          %s380 = sshll.u32 %s370, 4
          %s381 = int_to_ptr.vmem [resolvable:$true] %s380
          %386 = dma.vmem_to_hbm [thread:$0]  %s381, 1024, %s379, %s367, 256, 512, 16
        $region44: #{tpu_custom_call.1} parent=31 // pred_fallthru
          _
      $region32: #{tpu_custom_call.1} parent=5 // pred_fallthru
        _
      %p387 = scmp.le.s32.totalorder 2, %s17
      // Predicated region
      $region45: #{tpu_custom_call.1} parent=5 // pred_check
        %p388 = pneg %p387
      $region46: #{tpu_custom_call.1} parent=5 // pred_check_branch
        %390 = sbr.rel (%p388) target = $region48
      $region47: #{tpu_custom_call.1} parent=5 // pred_region
        %s391 = ssub.s32 %s17, 2
        // Predicated region
        $region49: #{tpu_custom_call.1} parent=47 // pred_check
          %p392 = pneg %p114
        $region50: #{tpu_custom_call.1} parent=47 // pred_check_branch
          %394 = sbr.rel (%p392) target = $region52
        $region51: #{tpu_custom_call.1} parent=47 // pred_region
          %s395 = sand.u32 %s99, 1
          %s396 = scalar_lea.sflag [#allocation5], %s395
          %s397 = sand.u32 %s99, 1
          %s398 = smul.addr %s397, 64
          %s399 = scalar_lea.vmem [#allocation8], %s398
          %400 = dma.done %s396, 1024
        $region52: #{tpu_custom_call.1} parent=47 // pred_fallthru
          _
      $region48: #{tpu_custom_call.1} parent=5 // pred_fallthru
        _
    $region6: #{tpu_custom_call.1} parent=1 // loop_footer
      %s21 = sadd.s32 1, %s17
    $region7: #{tpu_custom_call.1} parent=1 // loop_footer_branch
      %16 = sbr.rel target = $region3
    $region8: #{tpu_custom_call.1} parent=1 // loop_exit
      _
    %401 = vsyncpa [#allocation4], 1
    %s402 = scalar_lea.sflag [#allocation4], 1
    %403 = vsyncpa %s402, 1
    %404 = vsyncpa [#allocation7], 1
    %s405 = scalar_lea.sflag [#allocation7], 1
    %406 = vsyncpa %s405, 1
    %407 = vsyncpa [#allocation5], 1
    %s408 = scalar_lea.sflag [#allocation5], 1
    %409 = vsyncpa %s408, 1

</llo_original>
